<compile_context>
chip_gen: v5e
topology: v5e:2x2
jax: 0.10.0
libtpu: 0.0.40
codegen_flags: <defaults>
</compile_context>

<pallas_src>
import functools

import jax
import jax.numpy as jnp
from jax.experimental import pallas as pl
from jax.experimental.pallas import tpu as pltpu


def _round_up(x, m):
    return (x + m - 1) // m * m


def make_mlp_kernel(num_layers):
    """Fused MLP kernel: all layers of one batch tile in a single body."""

    def kernel(*refs):
        x_ref = refs[0]
        out_ref = refs[-1]
        param_refs = refs[1:-1]  # [W0, b0, W1, b1, ...]

        h = x_ref[...]  # (block_b, dim_in), f32
        for l in range(num_layers):
            w = param_refs[2 * l][...]          # (fan_in, fan_out)
            b = param_refs[2 * l + 1][...]      # (1, fan_out), broadcasts
            h = jnp.dot(h, w, preferred_element_type=jnp.float32) + b
            if l < num_layers - 1:
                h = jnp.maximum(h, 0.0)  # ReLU; Dropout(0.2) is identity in eval
        out_ref[...] = h.astype(out_ref.dtype)

    return kernel


def q_net_forward(obs, params, *, block_b=512):
    """Q_Net MLP forward pass with a Pallas TPU kernel.

    obs:    (B, dim_in) float32 (any B; padded internally).
    params: list of (W, b) with W: (fan_in, fan_out), b: (1, fan_out).
    """
    B, dim_in = obs.shape
    num_layers = len(params)
    n_action = params[-1][0].shape[-1]

    # ---- lane-dense output: pad the last layer to a multiple of 128 lanes ----
    out_pad = _round_up(n_action, 128)
    w_last, b_last = params[-1]
    if out_pad != n_action:
        w_last = jnp.pad(w_last, ((0, 0), (0, out_pad - n_action)))
        b_last = jnp.pad(b_last, ((0, 0), (0, out_pad - n_action)))
    padded_params = list(params[:-1]) + [(w_last, b_last)]

    # ---- batch tiling: big tiles, sublane-aligned, >=2 grid steps if possible
    b_aligned = _round_up(B, 8)
    blk = max(8, _round_up(min(block_b, b_aligned), 8))
    if b_aligned // blk < 2 and b_aligned >= 16:
        # split so the grid has at least 2 steps (v7x megacore sharding)
        blk = max(8, _round_up(pl.cdiv(b_aligned, 2), 8))
    B_pad = _round_up(b_aligned, blk)
    grid = B_pad // blk

    if B_pad != B:
        obs = jnp.pad(obs, ((0, B_pad - B), (0, 0)))

    flat_params = []
    in_specs = [
        # batch-tiled activations (last dim == full dim_in, so no (8,128) issue)
        pl.BlockSpec((blk, dim_in), lambda i: (i, 0)),
    ]
    for w, b in padded_params:
        flat_params.extend([w, b])
        # weights / biases: whole-array blocks, identical for every grid step
        in_specs.append(pl.BlockSpec(w.shape, lambda i: (0, 0)))
        in_specs.append(pl.BlockSpec(b.shape, lambda i: (0, 0)))

    out = pl.pallas_call(
        make_mlp_kernel(num_layers),
        out_shape=jax.ShapeDtypeStruct((B_pad, out_pad), jnp.float32),
        grid=(grid,),
        in_specs=in_specs,
        out_specs=pl.BlockSpec((blk, out_pad), lambda i: (i, 0)),
        compiler_params=pltpu.CompilerParams(
            dimension_semantics=("parallel",)
        ),
    )(obs, *flat_params)

    # drop batch padding rows and the zeroed output lanes
    return out[:B, :n_action]


def init_linear(key, fan_in, fan_out):
    """PyTorch-style Linear init: U(-1/sqrt(fan_in), 1/sqrt(fan_in))."""
    kw, kb = jax.random.split(key)
    bound = 1.0 / jnp.sqrt(jnp.float32(fan_in))
    w = jax.random.uniform(kw, (fan_in, fan_out), jnp.float32, -bound, bound)
    b = jax.random.uniform(kb, (1, fan_out), jnp.float32, -bound, bound)
    return w, b


def init_q_net_params(key, dim_in, mlp_dim, n_action, mlp_layers):
    dims = [dim_in] + [mlp_dim] * (mlp_layers - 1) + [n_action]
    params = []
    keys = jax.random.split(key, mlp_layers)
    for l in range(mlp_layers):
        params.append(init_linear(keys[l], dims[l], dims[l + 1]))
    return params


def reference_forward(obs, params):
    """Plain-JAX reference (eval-mode MLP)."""
    h = obs
    for l, (w, b) in enumerate(params):
        h = h @ w + b
        if l < len(params) - 1:
            h = jnp.maximum(h, 0.0)
    return h


if __name__ == "__main__":
    # args: ckt_dim=13, large_feature=False -> dim_in = 13*2 + 6 = 32
    #       mlp_dim=32, n_action=8, mlp_layers=3
    ckt_dim = 13
    dim_in = ckt_dim * 2 + 6          # 32
    mlp_dim = 32
    n_action = 8
    mlp_layers = 3
    batch = 40                        # not a tile multiple: exercises padding + 2-step grid

    key = jax.random.PRNGKey(0)
    k_obs, k_params = jax.random.split(key)

    obs = jax.random.normal(k_obs, (batch, dim_in), jnp.float32)
    params = init_q_net_params(k_params, dim_in, mlp_dim, n_action, mlp_layers)

    fwd = jax.jit(functools.partial(q_net_forward, block_b=512))
    y = fwd(obs, params)
    jax.block_until_ready(y)

    y_ref = reference_forward(obs, params)
    assert y.shape == (batch, n_action)
    assert jnp.allclose(y, y_ref, atol=1e-5, rtol=1e-5), "mismatch vs reference"

    print("KERNEL_OK")
</pallas_src>

<mosaic_0001>
module attributes {stable_mosaic.version = 11 : i64} {
  func.func @kernel(%arg0: i32, %arg1: memref<24x32xf32, #tpu.memory_space<vmem>>, %arg2: memref<32x32xf32, #tpu.memory_space<vmem>>, %arg3: memref<1x32xf32, #tpu.memory_space<vmem>>, %arg4: memref<32x32xf32, #tpu.memory_space<vmem>>, %arg5: memref<1x32xf32, #tpu.memory_space<vmem>>, %arg6: memref<32x128xf32, #tpu.memory_space<vmem>>, %arg7: memref<1x128xf32, #tpu.memory_space<vmem>>, %arg8: memref<24x128xf32, #tpu.memory_space<vmem>>) attributes {dimension_semantics = [#tpu.dimension_semantics<parallel>], iteration_bounds = array<i64: 2>, scalar_prefetch = 0 : i64, scratch_operands = 0 : i64, tpu.core_type = #tpu.core_type<tc>, window_params = [{transform_indices = @transform_0, window_bounds = array<i64: 24, 32>}, {pipeline_mode = #tpu.pipeline_mode<synchronous>, transform_indices = @transform_1, window_bounds = array<i64: 32, 32>}, {pipeline_mode = #tpu.pipeline_mode<synchronous>, transform_indices = @transform_2, window_bounds = array<i64: 1, 32>}, {pipeline_mode = #tpu.pipeline_mode<synchronous>, transform_indices = @transform_3, window_bounds = array<i64: 32, 32>}, {pipeline_mode = #tpu.pipeline_mode<synchronous>, transform_indices = @transform_4, window_bounds = array<i64: 1, 32>}, {pipeline_mode = #tpu.pipeline_mode<synchronous>, transform_indices = @transform_5, window_bounds = array<i64: 32, 128>}, {pipeline_mode = #tpu.pipeline_mode<synchronous>, transform_indices = @transform_6, window_bounds = array<i64: 1, 128>}, {transform_indices = @transform_7, window_bounds = array<i64: 24, 128>}]} {
    %c0 = arith.constant 0 : index
    %c0_0 = arith.constant 0 : index
    %0 = vector.load %arg1[%c0, %c0_0] : memref<24x32xf32, #tpu.memory_space<vmem>>, vector<24x32xf32>
    %c0_1 = arith.constant 0 : index
    %c0_2 = arith.constant 0 : index
    %1 = vector.load %arg2[%c0_1, %c0_2] : memref<32x32xf32, #tpu.memory_space<vmem>>, vector<32x32xf32>
    %c0_3 = arith.constant 0 : index
    %c0_4 = arith.constant 0 : index
    %2 = vector.load %arg3[%c0_3, %c0_4] : memref<1x32xf32, #tpu.memory_space<vmem>>, vector<1x32xf32>
    %cst = arith.constant dense<0.000000e+00> : vector<24x32xf32>
    %3 = tpu.matmul %0, %1, %cst {dimension_numbers = #tpu.dot_dimension_numbers<[1], [0], [0], [1], [0, 0, 1, 1], [], []>} : vector<24x32xf32>, vector<32x32xf32>, vector<24x32xf32> -> vector<24x32xf32>
    %4 = vector.broadcast %2 : vector<1x32xf32> to vector<24x32xf32>
    %5 = arith.addf %3, %4 : vector<24x32xf32>
    %cst_5 = arith.constant 0.000000e+00 : f32
    %6 = vector.broadcast %cst_5 : f32 to vector<24x32xf32>
    %7 = arith.maximumf %5, %6 : vector<24x32xf32>
    %c0_6 = arith.constant 0 : index
    %c0_7 = arith.constant 0 : index
    %8 = vector.load %arg4[%c0_6, %c0_7] : memref<32x32xf32, #tpu.memory_space<vmem>>, vector<32x32xf32>
    %c0_8 = arith.constant 0 : index
    %c0_9 = arith.constant 0 : index
    %9 = vector.load %arg5[%c0_8, %c0_9] : memref<1x32xf32, #tpu.memory_space<vmem>>, vector<1x32xf32>
    %cst_10 = arith.constant dense<0.000000e+00> : vector<24x32xf32>
    %10 = tpu.matmul %7, %8, %cst_10 {dimension_numbers = #tpu.dot_dimension_numbers<[1], [0], [0], [1], [0, 0, 1, 1], [], []>} : vector<24x32xf32>, vector<32x32xf32>, vector<24x32xf32> -> vector<24x32xf32>
    %11 = vector.broadcast %9 : vector<1x32xf32> to vector<24x32xf32>
    %12 = arith.addf %10, %11 : vector<24x32xf32>
    %cst_11 = arith.constant 0.000000e+00 : f32
    %13 = vector.broadcast %cst_11 : f32 to vector<24x32xf32>
    %14 = arith.maximumf %12, %13 : vector<24x32xf32>
    %c0_12 = arith.constant 0 : index
    %c0_13 = arith.constant 0 : index
    %15 = vector.load %arg6[%c0_12, %c0_13] : memref<32x128xf32, #tpu.memory_space<vmem>>, vector<32x128xf32>
    %c0_14 = arith.constant 0 : index
    %c0_15 = arith.constant 0 : index
    %16 = vector.load %arg7[%c0_14, %c0_15] : memref<1x128xf32, #tpu.memory_space<vmem>>, vector<1x128xf32>
    %cst_16 = arith.constant dense<0.000000e+00> : vector<24x128xf32>
    %17 = tpu.matmul %14, %15, %cst_16 {dimension_numbers = #tpu.dot_dimension_numbers<[1], [0], [0], [1], [0, 0, 1, 1], [], []>} : vector<24x32xf32>, vector<32x128xf32>, vector<24x128xf32> -> vector<24x128xf32>
    %18 = vector.broadcast %16 : vector<1x128xf32> to vector<24x128xf32>
    %19 = arith.addf %17, %18 : vector<24x128xf32>
    %c0_17 = arith.constant 0 : index
    %c0_18 = arith.constant 0 : index
    %20 = vector.load %arg8[%c0_17, %c0_18] : memref<24x128xf32, #tpu.memory_space<vmem>>, vector<24x128xf32>
    tpu.vector_store %arg8[%c0_17, %c0_18], %19 {strides = array<i32>} : memref<24x128xf32, #tpu.memory_space<vmem>>, vector<24x128xf32>,
    return
  }
  func.func @transform_0(%arg0: i32) -> (i32, i32) {
    %c0_i32 = arith.constant 0 : i32
    %c0_i32_0 = arith.constant 0 : i32
    return %arg0, %c0_i32 : i32, i32
  }
  func.func @transform_1(%arg0: i32) -> (i32, i32) {
    %c0_i32 = arith.constant 0 : i32
    %c0_i32_0 = arith.constant 0 : i32
    %c0_i32_1 = arith.constant 0 : i32
    return %c0_i32, %c0_i32_0 : i32, i32
  }
  func.func @transform_2(%arg0: i32) -> (i32, i32) {
    %c0_i32 = arith.constant 0 : i32
    %c0_i32_0 = arith.constant 0 : i32
    %c0_i32_1 = arith.constant 0 : i32
    return %c0_i32, %c0_i32_0 : i32, i32
  }
  func.func @transform_3(%arg0: i32) -> (i32, i32) {
    %c0_i32 = arith.constant 0 : i32
    %c0_i32_0 = arith.constant 0 : i32
    %c0_i32_1 = arith.constant 0 : i32
    return %c0_i32, %c0_i32_0 : i32, i32
  }
  func.func @transform_4(%arg0: i32) -> (i32, i32) {
    %c0_i32 = arith.constant 0 : i32
    %c0_i32_0 = arith.constant 0 : i32
    %c0_i32_1 = arith.constant 0 : i32
    return %c0_i32, %c0_i32_0 : i32, i32
  }
  func.func @transform_5(%arg0: i32) -> (i32, i32) {
    %c0_i32 = arith.constant 0 : i32
    %c0_i32_0 = arith.constant 0 : i32
    %c0_i32_1 = arith.constant 0 : i32
    return %c0_i32, %c0_i32_0 : i32, i32
  }
  func.func @transform_6(%arg0: i32) -> (i32, i32) {
    %c0_i32 = arith.constant 0 : i32
    %c0_i32_0 = arith.constant 0 : i32
    %c0_i32_1 = arith.constant 0 : i32
    return %c0_i32, %c0_i32_0 : i32, i32
  }
  func.func @transform_7(%arg0: i32) -> (i32, i32) {
    %c0_i32 = arith.constant 0 : i32
    %c0_i32_0 = arith.constant 0 : i32
    return %arg0, %c0_i32 : i32, i32
  }
}

</mosaic_0001>

<llo_original>
// kernel: q_net_forward.1
$region0: #{q_net_forward.1}
  #allocation0 [shape = 'u32[]', space=smem, size = 0x4, offset = 0x4, fixed_abs, tag = 'smem constant byte address 0x4 - core index']
  #allocation1 [shape = 'u32[72,128]{1,0:T(1,128)}', space=vmem, size = 0x9000, scoped, tag = 'internal scratch']
  %s0 = inlined_call_operand.vmem [shape: f32[48,32], index: 0, kind: input, shape index: {}]
  %s1 = inlined_call_operand.vmem [shape: f32[32,32], index: 1, kind: input, shape index: {}]
  %s2 = inlined_call_operand.vmem [shape: f32[1,32], index: 2, kind: input, shape index: {}]
  %s3 = inlined_call_operand.vmem [shape: f32[32,32], index: 3, kind: input, shape index: {}]
  %s4 = inlined_call_operand.vmem [shape: f32[1,32], index: 4, kind: input, shape index: {}]
  %s5 = inlined_call_operand.vmem [shape: f32[32,128], index: 5, kind: input, shape index: {}]
  %s6 = inlined_call_operand.vmem [shape: f32[1,128], index: 6, kind: input, shape index: {}]
  %s7 = inlined_call_operand.vmem [shape: f32[48,128], index: 7, kind: output, shape index: {}]
  %s8 = sld [smem:[#allocation0]]
  $region61: #{q_net_forward.1} parent=0
    _
  %s10 = ssub.s32 1, %s8
  %s11 = scalar_select 0, %s10, %s8
  loop: start=0, step=1, limit=4
  $region2: #{q_net_forward.1} parent=0 // loop_pre_header
    _
  $region3: #{q_net_forward.1} parent=0 // loop_header
    %s13 = sphi 0, %s17
    %p14 = scmp.ge.s32.totalorder %s13, 4
    %s23 = sphi 0, %s25
    %s26 = sphi 0, %s23
    %s27 = sphi 0, %s26
    %s43 = sphi 0, %s27
    %s47 = sphi 0, %s47
    %s49 = sphi 0, %s47
    %s50 = sphi 0, %s49
    %s64 = sphi 0, %s50
    %s68 = sphi 0, %s68
    %s70 = sphi 0, %s68
    %s71 = sphi 0, %s70
    %s85 = sphi 0, %s71
    %s89 = sphi 0, %s89
    %s91 = sphi 0, %s89
    %s92 = sphi 0, %s91
    %s106 = sphi 0, %s92
    %s110 = sphi 0, %s110
    %s112 = sphi 0, %s110
    %s113 = sphi 0, %s112
    %s127 = sphi 0, %s113
    %s131 = sphi 0, %s131
    %s133 = sphi 0, %s131
    %s134 = sphi 0, %s133
    %s148 = sphi 0, %s134
    %s152 = sphi 0, %s152
    %s154 = sphi 0, %s152
    %s155 = sphi 0, %s154
    %s169 = sphi 0, %s155
    %s175 = sphi 0, %s177
    %s178 = sphi 0, %s175
    %s179 = sphi 0, %s178
    %s195 = sphi 0, %s179
  $region4: #{q_net_forward.1} parent=0 // loop_header_branch
    %16 = sbr.rel (%p14) target = $region8
  $region5: #{q_net_forward.1} parent=0 // loop_body
    %s18 = ssub.s32 %s13, 1
    %s19 = ssub.s32 %s13, 2
    %s20 = sadd.s32 %s13, 1
    %s21 = ssub.s32 %s13, %s20
    %p22 = scmp.eq.s32.totalorder %s21, 0
    %s24 = sadd.s32 %s23, 1
    %s25 = scalar_select %p22, %s23, %s24
    %p28 = pneg %p22
    %p29 = scmp.eq.s32.totalorder %s13, 1
    %p30 = por %p28, %p29
    %p31 = scmp.ne.s32.totalorder %s23, %s26
    %p32 = scmp.eq.s32.totalorder %s13, 0
    %p33 = por %p31, %p32
    %p34 = scmp.ne.s32.totalorder %s23, %s26
    %p35 = scmp.eq.s32.totalorder %s18, 1
    %p36 = por %p34, %p35
    %p37 = scmp.ne.s32.totalorder %s26, %s27
    %p38 = scmp.eq.s32.totalorder %s18, 0
    %p39 = por %p37, %p38
    %p40 = scmp.ne.s32.totalorder %s26, %s27
    %p41 = scmp.eq.s32.totalorder %s19, 1
    %p42 = por %p40, %p41
    %p44 = scmp.ne.s32.totalorder %s27, %s43
    %p45 = scmp.eq.s32.totalorder %s19, 0
    %p46 = por %p44, %p45
    %s48 = sadd.s32 %s47, 1
    %p51 = scmp.eq.s32.totalorder %s13, 1
    %p52 = scmp.ne.s32.totalorder %s47, %s49
    %p53 = scmp.eq.s32.totalorder %s13, 0
    %p54 = por %p52, %p53
    %p55 = scmp.ne.s32.totalorder %s47, %s49
    %p56 = scmp.eq.s32.totalorder %s18, 1
    %p57 = por %p55, %p56
    %p58 = scmp.ne.s32.totalorder %s49, %s50
    %p59 = scmp.eq.s32.totalorder %s18, 0
    %p60 = por %p58, %p59
    %p61 = scmp.ne.s32.totalorder %s49, %s50
    %p62 = scmp.eq.s32.totalorder %s19, 1
    %p63 = por %p61, %p62
    %p65 = scmp.ne.s32.totalorder %s50, %s64
    %p66 = scmp.eq.s32.totalorder %s19, 0
    %p67 = por %p65, %p66
    %s69 = sadd.s32 %s68, 1
    %p72 = scmp.eq.s32.totalorder %s13, 1
    %p73 = scmp.ne.s32.totalorder %s68, %s70
    %p74 = scmp.eq.s32.totalorder %s13, 0
    %p75 = por %p73, %p74
    %p76 = scmp.ne.s32.totalorder %s68, %s70
    %p77 = scmp.eq.s32.totalorder %s18, 1
    %p78 = por %p76, %p77
    %p79 = scmp.ne.s32.totalorder %s70, %s71
    %p80 = scmp.eq.s32.totalorder %s18, 0
    %p81 = por %p79, %p80
    %p82 = scmp.ne.s32.totalorder %s70, %s71
    %p83 = scmp.eq.s32.totalorder %s19, 1
    %p84 = por %p82, %p83
    %p86 = scmp.ne.s32.totalorder %s71, %s85
    %p87 = scmp.eq.s32.totalorder %s19, 0
    %p88 = por %p86, %p87
    %s90 = sadd.s32 %s89, 1
    %p93 = scmp.eq.s32.totalorder %s13, 1
    %p94 = scmp.ne.s32.totalorder %s89, %s91
    %p95 = scmp.eq.s32.totalorder %s13, 0
    %p96 = por %p94, %p95
    %p97 = scmp.ne.s32.totalorder %s89, %s91
    %p98 = scmp.eq.s32.totalorder %s18, 1
    %p99 = por %p97, %p98
    %p100 = scmp.ne.s32.totalorder %s91, %s92
    %p101 = scmp.eq.s32.totalorder %s18, 0
    %p102 = por %p100, %p101
    %p103 = scmp.ne.s32.totalorder %s91, %s92
    %p104 = scmp.eq.s32.totalorder %s19, 1
    %p105 = por %p103, %p104
    %p107 = scmp.ne.s32.totalorder %s92, %s106
    %p108 = scmp.eq.s32.totalorder %s19, 0
    %p109 = por %p107, %p108
    %s111 = sadd.s32 %s110, 1
    %p114 = scmp.eq.s32.totalorder %s13, 1
    %p115 = scmp.ne.s32.totalorder %s110, %s112
    %p116 = scmp.eq.s32.totalorder %s13, 0
    %p117 = por %p115, %p116
    %p118 = scmp.ne.s32.totalorder %s110, %s112
    %p119 = scmp.eq.s32.totalorder %s18, 1
    %p120 = por %p118, %p119
    %p121 = scmp.ne.s32.totalorder %s112, %s113
    %p122 = scmp.eq.s32.totalorder %s18, 0
    %p123 = por %p121, %p122
    %p124 = scmp.ne.s32.totalorder %s112, %s113
    %p125 = scmp.eq.s32.totalorder %s19, 1
    %p126 = por %p124, %p125
    %p128 = scmp.ne.s32.totalorder %s113, %s127
    %p129 = scmp.eq.s32.totalorder %s19, 0
    %p130 = por %p128, %p129
    %s132 = sadd.s32 %s131, 1
    %p135 = scmp.eq.s32.totalorder %s13, 1
    %p136 = scmp.ne.s32.totalorder %s131, %s133
    %p137 = scmp.eq.s32.totalorder %s13, 0
    %p138 = por %p136, %p137
    %p139 = scmp.ne.s32.totalorder %s131, %s133
    %p140 = scmp.eq.s32.totalorder %s18, 1
    %p141 = por %p139, %p140
    %p142 = scmp.ne.s32.totalorder %s133, %s134
    %p143 = scmp.eq.s32.totalorder %s18, 0
    %p144 = por %p142, %p143
    %p145 = scmp.ne.s32.totalorder %s133, %s134
    %p146 = scmp.eq.s32.totalorder %s19, 1
    %p147 = por %p145, %p146
    %p149 = scmp.ne.s32.totalorder %s134, %s148
    %p150 = scmp.eq.s32.totalorder %s19, 0
    %p151 = por %p149, %p150
    %s153 = sadd.s32 %s152, 1
    %p156 = scmp.eq.s32.totalorder %s13, 1
    %p157 = scmp.ne.s32.totalorder %s152, %s154
    %p158 = scmp.eq.s32.totalorder %s13, 0
    %p159 = por %p157, %p158
    %p160 = scmp.ne.s32.totalorder %s152, %s154
    %p161 = scmp.eq.s32.totalorder %s18, 1
    %p162 = por %p160, %p161
    %p163 = scmp.ne.s32.totalorder %s154, %s155
    %p164 = scmp.eq.s32.totalorder %s18, 0
    %p165 = por %p163, %p164
    %p166 = scmp.ne.s32.totalorder %s154, %s155
    %p167 = scmp.eq.s32.totalorder %s19, 1
    %p168 = por %p166, %p167
    %p170 = scmp.ne.s32.totalorder %s155, %s169
    %p171 = scmp.eq.s32.totalorder %s19, 0
    %p172 = por %p170, %p171
    %s173 = ssub.s32 %s13, %s20
    %p174 = scmp.eq.s32.totalorder %s173, 0
    %s176 = sadd.s32 %s175, 1
    %s177 = scalar_select %p174, %s175, %s176
    %p180 = pneg %p174
    %p181 = scmp.eq.s32.totalorder %s13, 1
    %p182 = por %p180, %p181
    %p183 = scmp.ne.s32.totalorder %s175, %s178
    %p184 = scmp.eq.s32.totalorder %s13, 0
    %p185 = por %p183, %p184
    %p186 = scmp.ne.s32.totalorder %s175, %s178
    %p187 = scmp.eq.s32.totalorder %s18, 1
    %p188 = por %p186, %p187
    %p189 = scmp.ne.s32.totalorder %s178, %s179
    %p190 = scmp.eq.s32.totalorder %s18, 0
    %p191 = por %p189, %p190
    %p192 = scmp.ne.s32.totalorder %s178, %s179
    %p193 = scmp.eq.s32.totalorder %s19, 1
    %p194 = por %p192, %p193
    %p196 = scmp.ne.s32.totalorder %s179, %s195
    %p197 = scmp.eq.s32.totalorder %s19, 0
    %p198 = por %p196, %p197
    %p199 = scmp.le.s32.totalorder 1, %s13
    %p200 = scmp.lt.s32.totalorder %s13, 3
    %p201 = pnand %p199, %p200
    %p202 = pneg %p201
    // Predicated region
    $region9: #{q_net_forward.1} parent=5 // pred_check
      _
    $region10: #{q_net_forward.1} parent=5 // pred_check_branch
      %204 = sbr.rel (%p201) target = $region12
    $region11: #{q_net_forward.1} parent=5 // pred_region
      %s205 = ssub.s32 %s13, 1
      // Predicated region
      $region13: #{q_net_forward.1} parent=11 // pred_check
        %p206 = pneg %p60
      $region14: #{q_net_forward.1} parent=11 // pred_check_branch
        %208 = sbr.rel (%p206) target = $region16
      $region15: #{q_net_forward.1} parent=11 // pred_region
        _
      $region16: #{q_net_forward.1} parent=11 // pred_fallthru
        _
      // Predicated region
      $region17: #{q_net_forward.1} parent=11 // pred_check
        %p209 = pneg %p81
      $region18: #{q_net_forward.1} parent=11 // pred_check_branch
        %211 = sbr.rel (%p209) target = $region20
      $region19: #{q_net_forward.1} parent=11 // pred_region
        _
      $region20: #{q_net_forward.1} parent=11 // pred_fallthru
        _
      // Predicated region
      $region21: #{q_net_forward.1} parent=11 // pred_check
        %p212 = pneg %p102
      $region22: #{q_net_forward.1} parent=11 // pred_check_branch
        %214 = sbr.rel (%p212) target = $region24
      $region23: #{q_net_forward.1} parent=11 // pred_region
        _
      $region24: #{q_net_forward.1} parent=11 // pred_fallthru
        _
      // Predicated region
      $region25: #{q_net_forward.1} parent=11 // pred_check
        %p215 = pneg %p123
      $region26: #{q_net_forward.1} parent=11 // pred_check_branch
        %217 = sbr.rel (%p215) target = $region28
      $region27: #{q_net_forward.1} parent=11 // pred_region
        _
      $region28: #{q_net_forward.1} parent=11 // pred_fallthru
        _
      // Predicated region
      $region29: #{q_net_forward.1} parent=11 // pred_check
        %p218 = pneg %p144
      $region30: #{q_net_forward.1} parent=11 // pred_check_branch
        %220 = sbr.rel (%p218) target = $region32
      $region31: #{q_net_forward.1} parent=11 // pred_region
        _
      $region32: #{q_net_forward.1} parent=11 // pred_fallthru
        _
      // Predicated region
      $region33: #{q_net_forward.1} parent=11 // pred_check
        %p221 = pneg %p165
      $region34: #{q_net_forward.1} parent=11 // pred_check_branch
        %223 = sbr.rel (%p221) target = $region36
      $region35: #{q_net_forward.1} parent=11 // pred_region
        _
      $region36: #{q_net_forward.1} parent=11 // pred_fallthru
        _
    $region12: #{q_net_forward.1} parent=5 // pred_fallthru
      _
    %p224 = scmp.lt.s32.totalorder %s13, 2
    // Predicated region
    $region37: #{q_net_forward.1} parent=5 // pred_check
      %p225 = pneg %p224
    $region38: #{q_net_forward.1} parent=5 // pred_check_branch
      %227 = sbr.rel (%p225) target = $region40
    $region39: #{q_net_forward.1} parent=5 // pred_region
      // Predicated region
      $region41: #{q_net_forward.1} parent=39 // pred_check
        %p228 = pneg %p33
      $region42: #{q_net_forward.1} parent=39 // pred_check_branch
        %230 = sbr.rel (%p228) target = $region44
      $region43: #{q_net_forward.1} parent=39 // pred_region
        %s231 = smul.u32 3, %s13
        %p232 = scmp.lt.s32.totalorder %s231, 5
        %s233 = scalar_select %p232, %s231, 5
        %s234 = smul.addr %s233, 8
        %s235 = scalar_lea.vmem %s0, %s234
        %s236 = smul.u32 3, %s13
      $region44: #{q_net_forward.1} parent=39 // pred_fallthru
        _
    $region40: #{q_net_forward.1} parent=5 // pred_fallthru
      _
    %p237 = scmp.le.s32.totalorder 1, %s13
    %p238 = scmp.lt.s32.totalorder %s13, 3
    %p239 = pnand %p237, %p238
    %p240 = pneg %p239
    // Predicated region
    $region45: #{q_net_forward.1} parent=5 // pred_check
      _
    $region46: #{q_net_forward.1} parent=5 // pred_check_branch
      %242 = sbr.rel (%p239) target = $region48
    $region47: #{q_net_forward.1} parent=5 // pred_region
      %s243 = ssub.s32 %s13, 1
      %s244 = smul.u32 3, %s18
      %p245 = scmp.lt.s32.totalorder %s244, 5
      %s246 = scalar_select %p245, %s244, 5
      %s247 = smul.addr %s246, 8
      %s248 = scalar_lea.vmem %s0, %s247
      %p249 = pneg %p39
      %p250 = pneg %p36
      %p251 = pneg %p60
      %p252 = pneg %p57
      %p253 = pneg %p81
      %p254 = pneg %p78
      %p255 = pneg %p102
      %p256 = pneg %p99
      %p257 = pneg %p123
      %p258 = pneg %p120
      %p259 = pneg %p144
      %p260 = pneg %p141
      %p261 = pneg %p165
      %p262 = pneg %p162
      %p263 = pneg %p191
      %p264 = pneg %p188
      %s265 = smul.u32 3, %s18
      %p266 = scmp.lt.s32.totalorder %s265, 5
      %s267 = scalar_select %p266, %s265, 5
      %s268 = smul.addr %s267, 8
      %s269 = scalar_lea.vmem %s7, %s268
      %s270 = smul.u32 3, %s18
      %p271 = scmp.lt.s32.totalorder %s270, 5
      %s272 = scalar_select %p271, %s270, 5
      %s273 = smul.addr %s272, 8
      %s274 = scalar_lea.vmem %s0, %s273
      %s275 = smul.u32 3, %s18
      %s276 = smul.u32 3, %s18
      %p277 = scmp.lt.s32.totalorder %s276, 5
      %s278 = scalar_select %p277, %s276, 5
      %s279 = smul.addr %s278, 8
      %s280 = scalar_lea.vmem %s7, %s279
      %s281 = smul.u32 3, %s18
      %v282 = vld [vmem:[%s274] sm:$0xff]
      %v283 = vld [vmem:[%s274 + $0x8] sm:$0xff]
      %v284 = vld [vmem:[%s274 + $0x10] sm:$0xff]
      %v285 = vld [vmem:[%s1] sm:$0xff]
      %v286 = vld [vmem:[%s1 + $0x8] sm:$0xff]
      %v287 = vld [vmem:[%s1 + $0x10] sm:$0xff]
      %v288 = vld [vmem:[%s1 + $0x18] sm:$0xff]
      %v289 = vld [vmem:[%s2] sm:$0x1]
      %v291 = vperm.slane %v289, 0
      %vm293 = vcmask 261120
      %v295 = vsel %vm293, %v282, 0
      %v298 = vsel %vm293, %v283, 0
      %v301 = vsel %vm293, %v284, 0
      %303 = vmatpush.msra.mxu0 0.0
      %304 = vmatpush.msra.mxu0 0.0
      %305 = vmatpush.msra.mxu0 0.0
      %306 = vmatpush.msra.mxu0 0.0
      %307 = vmatpush.msra.mxu0 0.0
      %308 = vmatpush.msra.mxu0 0.0
      %309 = vmatpush.msra.mxu0 0.0
      %310 = vmatpush.msra.mxu0 0.0
      %311 = vmatpush.msra.mxu0 0.0
      %312 = vmatpush.msra.mxu0 0.0
      %313 = vmatpush.msra.mxu0 0.0
      %314 = vmatpush.msra.mxu0 0.0
      %315 = vmatpush.msra.mxu0 %v288
      %316 = vmatpush.msra.mxu0 %v287
      %317 = vmatpush.msra.mxu0 %v286
      %318 = vmatpush.msra.mxu0 %v285
      %319 = vmatmul.f32.gmra.mxu0 %v295
      %v320 = vpop.f32.mrf.mxu0
      %v321 = vadd.f32 %v291, %v320
      %322 = vmatmul.f32.gmra.mxu0 %v298
      %v323 = vpop.f32.mrf.mxu0
      %v324 = vadd.f32 %v291, %v323
      %325 = vmatmul.f32.gmra.mxu0 %v301
      %v326 = vpop.f32.mrf.mxu0
      %v327 = vadd.f32 %v291, %v326
      %328 = vdwg.mxu0
      %v329 = vmax.f32 %v321, 0.0
      %v330 = vmax.f32 %v324, 0.0
      %v331 = vmax.f32 %v327, 0.0
      %v332 = vld [vmem:[%s3] sm:$0xff]
      %v333 = vld [vmem:[%s3 + $0x8] sm:$0xff]
      %v334 = vld [vmem:[%s3 + $0x10] sm:$0xff]
      %v335 = vld [vmem:[%s3 + $0x18] sm:$0xff]
      %v336 = vld [vmem:[%s4] sm:$0x1]
      %v338 = vperm.slane %v336, 0
      %v341 = vsel %vm293, %v329, 0
      %v344 = vsel %vm293, %v330, 0
      %v347 = vsel %vm293, %v331, 0
      %349 = vmatpush.msra.mxu0 0.0
      %350 = vmatpush.msra.mxu0 0.0
      %351 = vmatpush.msra.mxu0 0.0
      %352 = vmatpush.msra.mxu0 0.0
      %353 = vmatpush.msra.mxu0 0.0
      %354 = vmatpush.msra.mxu0 0.0
      %355 = vmatpush.msra.mxu0 0.0
      %356 = vmatpush.msra.mxu0 0.0
      %357 = vmatpush.msra.mxu0 0.0
      %358 = vmatpush.msra.mxu0 0.0
      %359 = vmatpush.msra.mxu0 0.0
      %360 = vmatpush.msra.mxu0 0.0
      %361 = vmatpush.msra.mxu0 %v335
      %362 = vmatpush.msra.mxu0 %v334
      %363 = vmatpush.msra.mxu0 %v333
      %364 = vmatpush.msra.mxu0 %v332
      %365 = vmatmul.f32.gmra.mxu0 %v341
      %v366 = vpop.f32.mrf.mxu0
      %v367 = vadd.f32 %v338, %v366
      %368 = vmatmul.f32.gmra.mxu0 %v344
      %v369 = vpop.f32.mrf.mxu0
      %v370 = vadd.f32 %v338, %v369
      %371 = vmatmul.f32.gmra.mxu0 %v347
      %v372 = vpop.f32.mrf.mxu0
      %v373 = vadd.f32 %v338, %v372
      %374 = vdwg.mxu0
      %v375 = vmax.f32 %v367, 0.0
      %v376 = vmax.f32 %v370, 0.0
      %v377 = vmax.f32 %v373, 0.0
      %v378 = vld [vmem:[%s5] sm:$0xff]
      %v379 = vld [vmem:[%s5 + $0x8] sm:$0xff]
      %v380 = vld [vmem:[%s5 + $0x10] sm:$0xff]
      %v381 = vld [vmem:[%s5 + $0x18] sm:$0xff]
      %v382 = vld [vmem:[%s6] sm:$0x1]
      %v384 = vperm.slane %v382, 0
      %v387 = vsel %vm293, %v375, 0
      %v390 = vsel %vm293, %v376, 0
      %v393 = vsel %vm293, %v377, 0
      %395 = vmatpush.msra.mxu0 0.0
      %396 = vmatpush.msra.mxu0 0.0
      %397 = vmatpush.msra.mxu0 0.0
      %398 = vmatpush.msra.mxu0 0.0
      %399 = vmatpush.msra.mxu0 0.0
      %400 = vmatpush.msra.mxu0 0.0
      %401 = vmatpush.msra.mxu0 0.0
      %402 = vmatpush.msra.mxu0 0.0
      %403 = vmatpush.msra.mxu0 0.0
      %404 = vmatpush.msra.mxu0 0.0
      %405 = vmatpush.msra.mxu0 0.0
      %406 = vmatpush.msra.mxu0 0.0
      %407 = vmatpush.msra.mxu0 %v381
      %408 = vmatpush.msra.mxu0 %v380
      %409 = vmatpush.msra.mxu0 %v379
      %410 = vmatpush.msra.mxu0 %v378
      %411 = vmatmul.f32.gmra.mxu0 %v387
      %v412 = vpop.f32.mrf.mxu0
      %v413 = vadd.f32 %v384, %v412
      %414 = vmatmul.f32.gmra.mxu0 %v390
      %v415 = vpop.f32.mrf.mxu0
      %v416 = vadd.f32 %v384, %v415
      %417 = vmatmul.f32.gmra.mxu0 %v393
      %v418 = vpop.f32.mrf.mxu0
      %v419 = vadd.f32 %v384, %v418
      %420 = vdwg.mxu0
      %421 = vst [vmem:[%s280] sm:$0xff] %v413
      %422 = vst [vmem:[%s280 + $0x8] sm:$0xff] %v416
      %423 = vst [vmem:[%s280 + $0x10] sm:$0xff] %v419
      %s424 = smul.u32 3, %s18
      %p425 = scmp.lt.s32.totalorder %s424, 5
      %s426 = scalar_select %p425, %s424, 5
      %s427 = smul.addr %s426, 8
      %s428 = scalar_lea.vmem %s7, %s427
      // Predicated region
      $region49: #{q_net_forward.1} parent=47 // pred_check
        %p429 = pneg %p188
      $region50: #{q_net_forward.1} parent=47 // pred_check_branch
        %431 = sbr.rel (%p429) target = $region52
      $region51: #{q_net_forward.1} parent=47 // pred_region
        %s432 = smul.u32 3, %s18
      $region52: #{q_net_forward.1} parent=47 // pred_fallthru
        _
    $region48: #{q_net_forward.1} parent=5 // pred_fallthru
      _
    %p433 = scmp.le.s32.totalorder 2, %s13
    // Predicated region
    $region53: #{q_net_forward.1} parent=5 // pred_check
      %p434 = pneg %p433
    $region54: #{q_net_forward.1} parent=5 // pred_check_branch
      %436 = sbr.rel (%p434) target = $region56
    $region55: #{q_net_forward.1} parent=5 // pred_region
      %s437 = ssub.s32 %s13, 2
      // Predicated region
      $region57: #{q_net_forward.1} parent=55 // pred_check
        %p438 = pneg %p194
      $region58: #{q_net_forward.1} parent=55 // pred_check_branch
        %440 = sbr.rel (%p438) target = $region60
      $region59: #{q_net_forward.1} parent=55 // pred_region
        %s441 = smul.u32 3, %s19
        %p442 = scmp.lt.s32.totalorder %s441, 5
        %s443 = scalar_select %p442, %s441, 5
        %s444 = smul.addr %s443, 8
        %s445 = scalar_lea.vmem %s7, %s444
      $region60: #{q_net_forward.1} parent=55 // pred_fallthru
        _
    $region56: #{q_net_forward.1} parent=5 // pred_fallthru
      _
  $region6: #{q_net_forward.1} parent=0 // loop_footer
    %s17 = sadd.s32 1, %s13
  $region7: #{q_net_forward.1} parent=0 // loop_footer_branch
    %12 = sbr.rel target = $region3
  $region8: #{q_net_forward.1} parent=0 // loop_exit
    _

</llo_original>
